<compile_context>
chip_gen: v5e
topology: v5e:2x2
jax: 0.10.0
libtpu: 0.0.40
codegen_flags: <defaults>
</compile_context>

<pallas_src>
import functools

import jax
import jax.numpy as jnp
from jax.experimental import pallas as pl
from jax.experimental.pallas import tpu as pltpu

EPS = 1e-5  # PyTorch BatchNorm1d default


def _round_up(x, m):
    return ((x + m - 1) // m) * m


def _pick_tile_samples(N, L, cmax):
    """Samples per row tile.  Tiles contain whole samples only, so the k=3 conv
    never needs a halo across tile boundaries.  Prefer >=2 tiles (megacore /
    pipelining) and keep the double-buffered working set small on v7x (64 MiB)."""
    target_rows = max(8, (16 * 1024 * 1024) // (48 * cmax))
    divs = [d for d in range(1, N + 1) if N % d == 0]
    valid = [d for d in divs if (d * L) % 8 == 0 and d * L <= target_rows]
    multi = [d for d in valid if N // d >= 2]
    if multi:
        return max(multi)
    if valid:
        return max(valid)
    return N  # single tile: block rows == full array rows, so no (8,128) constraint


# --------------------------------- kernels ---------------------------------

def _conv3_rows(v_bf16, w_ref, L):
    """k=3, padding=1 conv along the row axis of a (TR, C) slab of whole samples.

    Three MXU matmuls on the unshifted operand, then roll/mask the f32 results
    (never materializes a (TR, 3C) im2col slab)."""
    TR, C = v_bf16.shape
    m0 = jnp.dot(v_bf16, w_ref[0 * C:1 * C, :], preferred_element_type=jnp.float32)
    m1 = jnp.dot(v_bf16, w_ref[1 * C:2 * C, :], preferred_element_type=jnp.float32)
    m2 = jnp.dot(v_bf16, w_ref[2 * C:3 * C, :], preferred_element_type=jnp.float32)
    pos = jax.lax.broadcasted_iota(jnp.int32, (TR, 1), 0) % L
    not_first = (pos != 0).astype(jnp.float32)        # zero the "prev" tap at l == 0
    not_last = (pos != (L - 1)).astype(jnp.float32)   # zero the "next" tap at l == L-1
    return (pltpu.roll(m0, 1, 0) * not_first + m1
            + pltpu.roll(m2, TR - 1, 0) * not_last)


def _pass1_kernel(x_ref, w1_ref, ws_ref, c1_ref, st_ref, *, L, has_proj):
    """conv1 (k=3) output + per-tile BN1 (and shortcut BN) sum / sum-of-squares."""
    xb = x_ref[...]                                    # bf16 (TR, Cp)
    c1 = _conv3_rows(xb, w1_ref, L)                    # f32  (TR, Cq)
    c1_ref[...] = c1.astype(c1_ref.dtype)
    s1 = jnp.sum(c1, axis=0, keepdims=True)
    q1 = jnp.sum(c1 * c1, axis=0, keepdims=True)
    if has_proj:
        sc = jnp.dot(xb, ws_ref[...], preferred_element_type=jnp.float32)
        ss = jnp.sum(sc, axis=0, keepdims=True)
        qs = jnp.sum(sc * sc, axis=0, keepdims=True)
    else:
        ss, qs = jnp.zeros_like(s1), jnp.zeros_like(q1)
    pad = jnp.zeros((4, c1.shape[1]), jnp.float32)
    st_ref[...] = jnp.concatenate([s1, q1, ss, qs, pad], axis=0)


def _pass2_kernel(c1_ref, w2_ref, scale1_ref, shift1_ref, c2_ref, st_ref, *, L):
    """apply folded BN1 + ReLU, conv2 (k=3), per-tile BN2 stats."""
    h = jnp.maximum(
        c1_ref[...].astype(jnp.float32) * scale1_ref[...] + shift1_ref[...], 0.0)
    c2 = _conv3_rows(h.astype(jnp.bfloat16), w2_ref, L)
    c2_ref[...] = c2
    s2 = jnp.sum(c2, axis=0, keepdims=True)
    q2 = jnp.sum(c2 * c2, axis=0, keepdims=True)
    st_ref[...] = jnp.concatenate(
        [s2, q2, jnp.zeros((6, c2.shape[1]), jnp.float32)], axis=0)


def _pass3_kernel(c2_ref, x_ref, ws_ref, scale2_ref, shift2_ref,
                  scale_s_ref, shift_s_ref, out_ref, *, has_proj):
    """apply BN2; shortcut = 1x1 conv (recomputed, cheap) + BN_s, or identity; add; ReLU."""
    y = c2_ref[...] * scale2_ref[...] + shift2_ref[...]
    if has_proj:
        sc = jnp.dot(x_ref[...], ws_ref[...], preferred_element_type=jnp.float32)
        r = sc * scale_s_ref[...] + shift_s_ref[...]
    else:
        r = x_ref[...].astype(jnp.float32)
    out_ref[...] = jnp.maximum(y + r, 0.0)


# --------------------------------- wrapper ----------------------------------

def _fold_bn(s, sq, count, gamma, beta):
    """Fold batch stats into a per-channel scale/shift: y = v*scale + shift."""
    mean = s / float(count)
    var = jnp.maximum(sq / float(count) - mean * mean, 0.0)  # clamp single-pass variance
    scale = gamma * jax.lax.rsqrt(var + EPS)
    shift = beta - mean * scale
    return scale, shift


def residual_block(x_ncl, params):
    """x_ncl: (N, C_in, L) float32 (PyTorch NCL).  Returns (N, C_out, L).

    params: 12-tuple (projection shortcut, in != out) or 8-tuple (identity shortcut):
      (conv1_w (3,Cin,Cout), conv1_b (1,Cout), bn1_gamma, bn1_beta,
       conv2_w (3,Cout,Cout), conv2_b, bn2_gamma, bn2_beta,
       [shortcut_w (Cin,Cout), shortcut_b, bn_s_gamma, bn_s_beta])
    Conv biases cancel under train-mode BatchNorm and are folded away.
    """
    has_proj = len(params) == 12
    if has_proj:
        w1, _b1, g1, be1, w2, _b2, g2, be2, ws, _bs, gs, bes = params
    else:
        w1, _b1, g1, be1, w2, _b2, g2, be2 = params
        ws = gs = bes = None

    N, Cin, L = x_ncl.shape
    Cout = w1.shape[2]
    NL = N * L
    Cp = _round_up(Cin, 128)     # lane-dense padded channel counts
    Cq = _round_up(Cout, 128)

    ts = _pick_tile_samples(N, L, max(Cp, Cq))
    ntiles = N // ts
    TR = ts * L                  # rows per grid tile (whole samples => no conv halo)

    # Channels-last, batch-flattened, lane-padded bf16 input slab.
    xf = jnp.transpose(x_ncl, (0, 2, 1)).reshape(NL, Cin)
    if Cp != Cin:
        xf = jnp.pad(xf, ((0, 0), (0, Cp - Cin)))
    xf = xf.astype(jnp.bfloat16)

    def pad_tap_w(w, ci, cip, co, cop):       # (3, ci, co) -> (3*cip, cop) bf16
        if (cip, cop) != (ci, co):
            w = jnp.pad(w, ((0, 0), (0, cip - ci), (0, cop - co)))
        return w.reshape(3 * cip, cop).astype(jnp.bfloat16)

    def pad_vec(p):                           # (1, Cout) -> (1, Cq) f32
        if Cq != Cout:
            p = jnp.pad(p, ((0, 0), (0, Cq - Cout)))
        return p.astype(jnp.float32)

    w1p = pad_tap_w(w1, Cin, Cp, Cout, Cq)
    w2p = pad_tap_w(w2, Cout, Cq, Cout, Cq)
    if has_proj:
        wsp = ws if (Cp, Cq) == (Cin, Cout) else jnp.pad(ws, ((0, Cp - Cin), (0, Cq - Cout)))
        wsp = wsp.astype(jnp.bfloat16)
    else:
        wsp = jnp.zeros((Cp, Cq), jnp.bfloat16)   # dummy; statically unused in kernels

    # Block specs: row tiles over N*L; weights / BN vectors use a constant block index.
    row_spec_x = pl.BlockSpec((TR, Cp), lambda i: (i, 0))
    row_spec_o = pl.BlockSpec((TR, Cq), lambda i: (i, 0))
    st_spec = pl.BlockSpec((8, Cq), lambda i: (i, 0))
    w1_spec = pl.BlockSpec((3 * Cp, Cq), lambda i: (0, 0))
    w2_spec = pl.BlockSpec((3 * Cq, Cq), lambda i: (0, 0))
    ws_spec = pl.BlockSpec((Cp, Cq), lambda i: (0, 0))
    vec_spec = pl.BlockSpec((1, Cq), lambda i: (0, 0))

    cparams = pltpu.CompilerParams(
        dimension_semantics=("parallel",),     # independent row tiles: megacore-shardable
        vmem_limit_bytes=48 * 1024 * 1024,     # <= v7x's 64 MiB; ample on v5e/v6e
    )

    # Pass 1: conv1 (+ shortcut conv for stats only) and BN1 / BN_s partials.
    c1, st1 = pl.pallas_call(
        functools.partial(_pass1_kernel, L=L, has_proj=has_proj),
        grid=(ntiles,),
        in_specs=[row_spec_x, w1_spec, ws_spec],
        out_specs=[row_spec_o, st_spec],
        out_shape=[jax.ShapeDtypeStruct((NL, Cq), jnp.bfloat16),
                   jax.ShapeDtypeStruct((ntiles * 8, Cq), jnp.float32)],
        compiler_params=cparams,
    )(xf, w1p, wsp)

    st1 = st1.reshape(ntiles, 8, Cq).sum(axis=0)       # tiny XLA reduction
    scale1, shift1 = _fold_bn(st1[0:1], st1[1:2], NL, pad_vec(g1), pad_vec(be1))
    if has_proj:
        scale_s, shift_s = _fold_bn(st1[2:3], st1[3:4], NL, pad_vec(gs), pad_vec(bes))
    else:
        scale_s = jnp.zeros((1, Cq), jnp.float32)
        shift_s = jnp.zeros((1, Cq), jnp.float32)

    # Pass 2: BN1 + ReLU + conv2 and BN2 partials.
    c2, st2 = pl.pallas_call(
        functools.partial(_pass2_kernel, L=L),
        grid=(ntiles,),
        in_specs=[row_spec_o, w2_spec, vec_spec, vec_spec],
        out_specs=[row_spec_o, st_spec],
        out_shape=[jax.ShapeDtypeStruct((NL, Cq), jnp.float32),
                   jax.ShapeDtypeStruct((ntiles * 8, Cq), jnp.float32)],
        compiler_params=cparams,
    )(c1, w2p, scale1, shift1)

    st2 = st2.reshape(ntiles, 8, Cq).sum(axis=0)
    scale2, shift2 = _fold_bn(st2[0:1], st2[1:2], NL, pad_vec(g2), pad_vec(be2))

    # Pass 3: BN2 + shortcut (1x1 conv recomputed or identity) + BN_s + add + ReLU.
    out_slab = pl.pallas_call(
        functools.partial(_pass3_kernel, has_proj=has_proj),
        grid=(ntiles,),
        in_specs=[row_spec_o, row_spec_x, ws_spec,
                  vec_spec, vec_spec, vec_spec, vec_spec],
        out_specs=row_spec_o,
        out_shape=jax.ShapeDtypeStruct((NL, Cq), jnp.float32),
        compiler_params=cparams,
    )(c2, xf, wsp, scale2, shift2, scale_s, shift_s)

    # TODO(synk): emitting channels-last (N, L, Cout) directly would avoid this
    # final slice/transpose copy; kept to match the PyTorch NCL interface.
    out = out_slab[:, :Cout].reshape(N, L, Cout)
    return jnp.transpose(out, (0, 2, 1))


# ------------------------------ pure-JAX reference ---------------------------

def reference_forward(x_ncl, params):
    """f32 reference mirroring the PyTorch forward (train-mode BN, with conv biases)."""
    has_proj = len(params) == 12
    if has_proj:
        w1, b1, g1, be1, w2, b2, g2, be2, ws, bs, gs, bes = params
    else:
        w1, b1, g1, be1, w2, b2, g2, be2 = params
    x = jnp.transpose(x_ncl, (0, 2, 1))                # (N, L, C)

    def conv3(v, w, b):
        n, l, _ = v.shape
        vp = jnp.pad(v, ((0, 0), (1, 1), (0, 0)))
        y = sum(jnp.einsum('nlc,co->nlo', vp[:, t:t + l, :], w[t]) for t in range(3))
        return y + b

    def bn(v, g, be):
        mean = v.mean(axis=(0, 1), keepdims=True)
        var = ((v - mean) ** 2).mean(axis=(0, 1), keepdims=True)
        return (v - mean) * jax.lax.rsqrt(var + EPS) * g + be

    r = bn(jnp.einsum('nlc,co->nlo', x, ws) + bs, gs, bes) if has_proj else x
    h = jax.nn.relu(bn(conv3(x, w1, b1), g1, be1))
    y = bn(conv3(h, w2, b2), g2, be2)
    out = jax.nn.relu(y + r)
    return jnp.transpose(out, (0, 2, 1))


if __name__ == "__main__":
    keys = jax.random.split(jax.random.PRNGKey(0), 24)

    # --- Case 1: projection shortcut (in_channels != out_channels) ---
    N, Cin, Cout, L = 2, 4, 8, 16
    params = (
        0.1 * jax.random.normal(keys[0], (3, Cin, Cout), jnp.float32),    # conv1 w
        0.1 * jax.random.normal(keys[1], (1, Cout), jnp.float32),         # conv1 b
        1.0 + 0.1 * jax.random.normal(keys[2], (1, Cout), jnp.float32),   # bn1 gamma
        0.1 * jax.random.normal(keys[3], (1, Cout), jnp.float32),         # bn1 beta
        0.1 * jax.random.normal(keys[4], (3, Cout, Cout), jnp.float32),   # conv2 w
        0.1 * jax.random.normal(keys[5], (1, Cout), jnp.float32),         # conv2 b
        1.0 + 0.1 * jax.random.normal(keys[6], (1, Cout), jnp.float32),   # bn2 gamma
        0.1 * jax.random.normal(keys[7], (1, Cout), jnp.float32),         # bn2 beta
        0.1 * jax.random.normal(keys[8], (Cin, Cout), jnp.float32),       # shortcut 1x1 w
        0.1 * jax.random.normal(keys[9], (1, Cout), jnp.float32),         # shortcut b
        1.0 + 0.1 * jax.random.normal(keys[10], (1, Cout), jnp.float32),  # shortcut gamma
        0.1 * jax.random.normal(keys[11], (1, Cout), jnp.float32),        # shortcut beta
    )
    x = jax.random.normal(keys[12], (N, Cin, L), jnp.float32)             # NCL like PyTorch

    out = jax.block_until_ready(residual_block(x, params))
    ref = reference_forward(x, params)
    assert out.shape == (N, Cout, L)
    assert bool(jnp.all(jnp.isfinite(out)))
    assert bool(jnp.allclose(out, ref, atol=3e-2, rtol=3e-2)), "projection case mismatch"

    # --- Case 2: identity shortcut (in_channels == out_channels), multi-tile grid ---
    N2, C2, L2 = 4, 8, 24
    params_id = (
        0.1 * jax.random.normal(keys[13], (3, C2, C2), jnp.float32),
        0.1 * jax.random.normal(keys[14], (1, C2), jnp.float32),
        1.0 + 0.1 * jax.random.normal(keys[15], (1, C2), jnp.float32),
        0.1 * jax.random.normal(keys[16], (1, C2), jnp.float32),
        0.1 * jax.random.normal(keys[17], (3, C2, C2), jnp.float32),
        0.1 * jax.random.normal(keys[18], (1, C2), jnp.float32),
        1.0 + 0.1 * jax.random.normal(keys[19], (1, C2), jnp.float32),
        0.1 * jax.random.normal(keys[20], (1, C2), jnp.float32),
    )
    x2 = jax.random.normal(keys[21], (N2, C2, L2), jnp.float32)

    out2 = jax.block_until_ready(residual_block(x2, params_id))
    ref2 = reference_forward(x2, params_id)
    assert out2.shape == (N2, C2, L2)
    assert bool(jnp.all(jnp.isfinite(out2)))
    assert bool(jnp.allclose(out2, ref2, atol=3e-2, rtol=3e-2)), "identity case mismatch"

    print("KERNEL_OK")
</pallas_src>

<mosaic_0001>
module attributes {stable_mosaic.version = 11 : i64} {
  func.func @_pass1_kernel(%arg0: i32, %arg1: memref<16x128xbf16, #tpu.memory_space<vmem>>, %arg2: memref<384x128xbf16, #tpu.memory_space<vmem>>, %arg3: memref<128x128xbf16, #tpu.memory_space<vmem>>, %arg4: memref<16x128xbf16, #tpu.memory_space<vmem>>, %arg5: memref<8x128xf32, #tpu.memory_space<vmem>>) attributes {dimension_semantics = [#tpu.dimension_semantics<parallel>], iteration_bounds = array<i64: 2>, scalar_prefetch = 0 : i64, scratch_operands = 0 : i64, tpu.core_type = #tpu.core_type<tc>, window_params = [{transform_indices = @transform_0, window_bounds = array<i64: 16, 128>}, {pipeline_mode = #tpu.pipeline_mode<synchronous>, transform_indices = @transform_1, window_bounds = array<i64: 384, 128>}, {pipeline_mode = #tpu.pipeline_mode<synchronous>, transform_indices = @transform_2, window_bounds = array<i64: 128, 128>}, {transform_indices = @transform_3, window_bounds = array<i64: 16, 128>}, {transform_indices = @transform_4, window_bounds = array<i64: 8, 128>}]} {
    %c0 = arith.constant 0 : index
    %c0_0 = arith.constant 0 : index
    %0 = vector.load %arg1[%c0, %c0_0] : memref<16x128xbf16, #tpu.memory_space<vmem>>, vector<16x128xbf16>
    %c0_1 = arith.constant 0 : index
    %c0_2 = arith.constant 0 : index
    %1 = vector.load %arg2[%c0_1, %c0_2] : memref<384x128xbf16, #tpu.memory_space<vmem>>, vector<128x128xbf16>
    %cst = arith.constant dense<0.000000e+00> : vector<16x128xf32>
    %2 = tpu.matmul %0, %1, %cst {dimension_numbers = #tpu.dot_dimension_numbers<[1], [0], [0], [1], [0, 0, 1, 1], [], []>} : vector<16x128xbf16>, vector<128x128xbf16>, vector<16x128xf32> -> vector<16x128xf32>
    %c128 = arith.constant 128 : index
    %c0_3 = arith.constant 0 : index
    %3 = vector.load %arg2[%c128, %c0_3] : memref<384x128xbf16, #tpu.memory_space<vmem>>, vector<128x128xbf16>
    %cst_4 = arith.constant dense<0.000000e+00> : vector<16x128xf32>
    %4 = tpu.matmul %0, %3, %cst_4 {dimension_numbers = #tpu.dot_dimension_numbers<[1], [0], [0], [1], [0, 0, 1, 1], [], []>} : vector<16x128xbf16>, vector<128x128xbf16>, vector<16x128xf32> -> vector<16x128xf32>
    %c256 = arith.constant 256 : index
    %c0_5 = arith.constant 0 : index
    %5 = vector.load %arg2[%c256, %c0_5] : memref<384x128xbf16, #tpu.memory_space<vmem>>, vector<128x128xbf16>
    %cst_6 = arith.constant dense<0.000000e+00> : vector<16x128xf32>
    %6 = tpu.matmul %0, %5, %cst_6 {dimension_numbers = #tpu.dot_dimension_numbers<[1], [0], [0], [1], [0, 0, 1, 1], [], []>} : vector<16x128xbf16>, vector<128x128xbf16>, vector<16x128xf32> -> vector<16x128xf32>
    %7 = tpu.iota {dimensions = array<i32: 0>} : vector<16x1xi32>
    %c16_i32 = arith.constant 16 : i32
    %c0_i32 = arith.constant 0 : i32
    %8 = arith.cmpi eq, %c16_i32, %c0_i32 : i32
    %c1_i32 = arith.constant 1 : i32
    %9 = arith.select %8, %c1_i32, %c16_i32 : i32
    %10 = vector.broadcast %9 : i32 to vector<16x1xi32>
    %11 = arith.remsi %7, %10 : vector<16x1xi32>
    %c0_i32_7 = arith.constant 0 : i32
    %12 = vector.broadcast %c0_i32_7 : i32 to vector<16x1xi32>
    %13 = arith.cmpi ne, %11, %12 : vector<16x1xi32>
    %c0_i32_8 = arith.constant 0 : i32
    %14 = vector.broadcast %c0_i32_8 : i32 to vector<16x1xi32>
    %15 = arith.cmpi slt, %11, %14 : vector<16x1xi32>
    %c0_i32_9 = arith.constant 0 : i32
    %16 = arith.cmpi slt, %9, %c0_i32_9 : i32
    %17 = vector.broadcast %16 : i1 to vector<16x1xi1>
    %18 = vector.broadcast %17 : vector<16x1xi1> to vector<16x1xi1>
    %19 = arith.xori %15, %18 : vector<16x1xi1>
    %20 = arith.andi %19, %13 : vector<16x1xi1>
    %21 = vector.broadcast %9 : i32 to vector<16x1xi32>
    %22 = arith.addi %11, %21 : vector<16x1xi32>
    %23 = arith.select %20, %22, %11 : vector<16x1xi1>, vector<16x1xi32>
    %c0_i32_10 = arith.constant 0 : i32
    %24 = vector.broadcast %c0_i32_10 : i32 to vector<16x1xi32>
    %25 = arith.cmpi ne, %23, %24 : vector<16x1xi32>
    %26 = arith.extui %25 : vector<16x1xi1> to vector<16x1xi32>
    %27 = arith.sitofp %26 : vector<16x1xi32> to vector<16x1xf32>
    %c15_i32 = arith.constant 15 : i32
    %28 = vector.broadcast %c15_i32 : i32 to vector<16x1xi32>
    %29 = arith.cmpi ne, %23, %28 : vector<16x1xi32>
    %30 = arith.extui %29 : vector<16x1xi1> to vector<16x1xi32>
    %31 = arith.sitofp %30 : vector<16x1xi32> to vector<16x1xf32>
    %c1_i32_11 = arith.constant 1 : i32
    %32 = tpu.dynamic_rotate %2 by %c1_i32_11 dim 0 : vector<16x128xf32>, i32 -> vector<16x128xf32>
    %33 = vector.broadcast %27 : vector<16x1xf32> to vector<16x128xf32>
    %34 = arith.mulf %32, %33 : vector<16x128xf32>
    %35 = arith.addf %34, %4 : vector<16x128xf32>
    %c15_i32_12 = arith.constant 15 : i32
    %36 = tpu.dynamic_rotate %6 by %c15_i32_12 dim 0 : vector<16x128xf32>, i32 -> vector<16x128xf32>
    %37 = vector.broadcast %31 : vector<16x1xf32> to vector<16x128xf32>
    %38 = arith.mulf %36, %37 : vector<16x128xf32>
    %39 = arith.addf %35, %38 : vector<16x128xf32>
    %40 = arith.truncf %39 : vector<16x128xf32> to vector<16x128xbf16>
    %c0_13 = arith.constant 0 : index
    %c0_14 = arith.constant 0 : index
    %41 = vector.load %arg4[%c0_13, %c0_14] : memref<16x128xbf16, #tpu.memory_space<vmem>>, vector<16x128xbf16>
    tpu.vector_store %arg4[%c0_13, %c0_14], %40 {strides = array<i32>} : memref<16x128xbf16, #tpu.memory_space<vmem>>, vector<16x128xbf16>,
    %cst_15 = arith.constant dense<0.000000e+00> : vector<128xf32>
    %42 = vector.multi_reduction <add>, %39, %cst_15 [0] : vector<16x128xf32> to vector<128xf32>
    %43 = vector.shape_cast %42 : vector<128xf32> to vector<1x128xf32>
    %44 = arith.mulf %39, %39 : vector<16x128xf32>
    %cst_16 = arith.constant dense<0.000000e+00> : vector<128xf32>
    %45 = vector.multi_reduction <add>, %44, %cst_16 [0] : vector<16x128xf32> to vector<128xf32>
    %46 = vector.shape_cast %45 : vector<128xf32> to vector<1x128xf32>
    %c0_17 = arith.constant 0 : index
    %c0_18 = arith.constant 0 : index
    %47 = vector.load %arg3[%c0_17, %c0_18] : memref<128x128xbf16, #tpu.memory_space<vmem>>, vector<128x128xbf16>
    %cst_19 = arith.constant dense<0.000000e+00> : vector<16x128xf32>
    %48 = tpu.matmul %0, %47, %cst_19 {dimension_numbers = #tpu.dot_dimension_numbers<[1], [0], [0], [1], [0, 0, 1, 1], [], []>} : vector<16x128xbf16>, vector<128x128xbf16>, vector<16x128xf32> -> vector<16x128xf32>
    %cst_20 = arith.constant dense<0.000000e+00> : vector<128xf32>
    %49 = vector.multi_reduction <add>, %48, %cst_20 [0] : vector<16x128xf32> to vector<128xf32>
    %50 = vector.shape_cast %49 : vector<128xf32> to vector<1x128xf32>
    %51 = arith.mulf %48, %48 : vector<16x128xf32>
    %cst_21 = arith.constant dense<0.000000e+00> : vector<128xf32>
    %52 = vector.multi_reduction <add>, %51, %cst_21 [0] : vector<16x128xf32> to vector<128xf32>
    %53 = vector.shape_cast %52 : vector<128xf32> to vector<1x128xf32>
    %cst_22 = arith.constant 0.000000e+00 : f32
    %54 = vector.broadcast %cst_22 : f32 to vector<4x128xf32>
    %55 = tpu.concatenate %43, %46, %50, %53, %54 in 0 : vector<1x128xf32>, vector<1x128xf32>, vector<1x128xf32>, vector<1x128xf32>, vector<4x128xf32> -> vector<8x128xf32>
    %c0_23 = arith.constant 0 : index
    %c0_24 = arith.constant 0 : index
    %56 = vector.load %arg5[%c0_23, %c0_24] : memref<8x128xf32, #tpu.memory_space<vmem>>, vector<8x128xf32>
    tpu.vector_store %arg5[%c0_23, %c0_24], %55 {strides = array<i32>} : memref<8x128xf32, #tpu.memory_space<vmem>>, vector<8x128xf32>,
    return
  }
  func.func @transform_0(%arg0: i32) -> (i32, i32) {
    %c0_i32 = arith.constant 0 : i32
    %c0_i32_0 = arith.constant 0 : i32
    return %arg0, %c0_i32 : i32, i32
  }
  func.func @transform_1(%arg0: i32) -> (i32, i32) {
    %c0_i32 = arith.constant 0 : i32
    %c0_i32_0 = arith.constant 0 : i32
    %c0_i32_1 = arith.constant 0 : i32
    return %c0_i32, %c0_i32_0 : i32, i32
  }
  func.func @transform_2(%arg0: i32) -> (i32, i32) {
    %c0_i32 = arith.constant 0 : i32
    %c0_i32_0 = arith.constant 0 : i32
    %c0_i32_1 = arith.constant 0 : i32
    return %c0_i32, %c0_i32_0 : i32, i32
  }
  func.func @transform_3(%arg0: i32) -> (i32, i32) {
    %c0_i32 = arith.constant 0 : i32
    %c0_i32_0 = arith.constant 0 : i32
    return %arg0, %c0_i32 : i32, i32
  }
  func.func @transform_4(%arg0: i32) -> (i32, i32) {
    %c0_i32 = arith.constant 0 : i32
    %c0_i32_0 = arith.constant 0 : i32
    return %arg0, %c0_i32 : i32, i32
  }
}

</mosaic_0001>

<llo_original>
// kernel: tpu_custom_call.1
$region0: #{tpu_custom_call.1}
  #allocation0 [shape = 'u32[]', space=smem, size = 0x4, offset = 0x4, fixed_abs, tag = 'smem constant byte address 0x4 - core index']
  #allocation1 [shape = 'u32[72,128]{1,0:T(1,128)}', space=vmem, size = 0x9000, scoped, tag = 'internal scratch']
  %s0 = inlined_call_operand.hbm [shape: bf16[32,128], index: 0, kind: input, shape index: {}]
  %s1 = inlined_call_operand.hbm [shape: bf16[384,128], index: 1, kind: input, shape index: {}]
  %s2 = inlined_call_operand.hbm [shape: bf16[128,128], index: 2, kind: input, shape index: {}]
  %s3 = inlined_call_operand.hbm [shape: bf16[32,128], index: 3, kind: output, shape index: {0}]
  %s4 = inlined_call_operand.hbm [shape: f32[16,128], index: 4, kind: output, shape index: {1}]
  %5 = xla_tuple %s3, %s4
  %s6 = sld [smem:[#allocation0]]
  $region65: #{tpu_custom_call.1} parent=0
    _
  %s8 = ssub.s32 1, %s6
  %s9 = scalar_select 0, %s8, %s6
  $region1: #{tpu_custom_call.1} parent=0
    #allocation2 [shape = 'u8[8192]{0}', space=vmem, size = 0x2000, scoped, tag = 'input window, operand 0']
    #allocation3 [shape = 's32[2]{0}', space=sflag, size = 0x8, scoped, tag = 'scoped memory for tpu_custom_call.1']
    #allocation4 [shape = 's32[2]{0}', space=sflag, size = 0x8, scoped, tag = 'scoped memory for tpu_custom_call.1']
    #allocation5 [shape = 'u8[98304]{0}', space=vmem, size = 0x18000, scoped, tag = 'input window, operand 1, single buffered']
    #allocation6 [shape = 's32[1]{0}', space=sflag, size = 0x4, scoped, tag = 'scoped memory for tpu_custom_call.1']
    #allocation7 [shape = 'u8[32768]{0}', space=vmem, size = 0x8000, scoped, tag = 'input window, operand 2, single buffered']
    #allocation8 [shape = 'u8[8192]{0}', space=vmem, size = 0x2000, scoped, tag = 'output window, operand 0']
    #allocation9 [shape = 'u8[8192]{0}', space=vmem, size = 0x2000, scoped, tag = 'output window, operand 1']
    #allocation10 [shape = 's32[2]{0}', space=sflag, size = 0x8, scoped, tag = 'scoped memory for tpu_custom_call.1']
    %10 = vsyncpa [#allocation3], 0
    %s11 = scalar_lea.sflag [#allocation3], 1
    %12 = vsyncpa %s11, 0
    %13 = vsyncpa [#allocation6], 0
    %14 = vsyncpa [#allocation4], 0
    %s15 = scalar_lea.sflag [#allocation4], 1
    %16 = vsyncpa %s15, 0
    %17 = vsyncpa [#allocation10], 0
    %s18 = scalar_lea.sflag [#allocation10], 1
    %19 = vsyncpa %s18, 0
    loop: start=0, step=1, limit=4
    $region2: #{tpu_custom_call.1} parent=1 // loop_pre_header
      _
    $region3: #{tpu_custom_call.1} parent=1 // loop_header
      %s21 = sphi 0, %s25
      %p22 = scmp.ge.s32.totalorder %s21, 4
      %s31 = sphi 0, %s33
      %s34 = sphi 0, %s31
      %s35 = sphi 0, %s34
      %s51 = sphi 0, %s35
      %s55 = sphi 0, %s55
      %s57 = sphi 0, %s55
      %s58 = sphi 0, %s57
      %s72 = sphi 0, %s58
      %s76 = sphi 0, %s76
      %s78 = sphi 0, %s76
      %s79 = sphi 0, %s78
      %s93 = sphi 0, %s79
      %s99 = sphi 0, %s101
      %s102 = sphi 0, %s99
      %s103 = sphi 0, %s102
      %s119 = sphi 0, %s103
      %s125 = sphi 0, %s127
      %s128 = sphi 0, %s125
      %s129 = sphi 0, %s128
      %s145 = sphi 0, %s129
    $region4: #{tpu_custom_call.1} parent=1 // loop_header_branch
      %24 = sbr.rel (%p22) target = $region8
    $region5: #{tpu_custom_call.1} parent=1 // loop_body
      %s26 = ssub.s32 %s21, 1
      %s27 = ssub.s32 %s21, 2
      %s28 = sadd.s32 %s21, 1
      %s29 = ssub.s32 %s21, %s28
      %p30 = scmp.eq.s32.totalorder %s29, 0
      %s32 = sadd.s32 %s31, 1
      %s33 = scalar_select %p30, %s31, %s32
      %p36 = pneg %p30
      %p37 = scmp.eq.s32.totalorder %s21, 1
      %p38 = por %p36, %p37
      %p39 = scmp.ne.s32.totalorder %s31, %s34
      %p40 = scmp.eq.s32.totalorder %s21, 0
      %p41 = por %p39, %p40
      %p42 = scmp.ne.s32.totalorder %s31, %s34
      %p43 = scmp.eq.s32.totalorder %s26, 1
      %p44 = por %p42, %p43
      %p45 = scmp.ne.s32.totalorder %s34, %s35
      %p46 = scmp.eq.s32.totalorder %s26, 0
      %p47 = por %p45, %p46
      %p48 = scmp.ne.s32.totalorder %s34, %s35
      %p49 = scmp.eq.s32.totalorder %s27, 1
      %p50 = por %p48, %p49
      %p52 = scmp.ne.s32.totalorder %s35, %s51
      %p53 = scmp.eq.s32.totalorder %s27, 0
      %p54 = por %p52, %p53
      %s56 = sadd.s32 %s55, 1
      %p59 = scmp.eq.s32.totalorder %s21, 1
      %p60 = scmp.ne.s32.totalorder %s55, %s57
      %p61 = scmp.eq.s32.totalorder %s21, 0
      %p62 = por %p60, %p61
      %p63 = scmp.ne.s32.totalorder %s55, %s57
      %p64 = scmp.eq.s32.totalorder %s26, 1
      %p65 = por %p63, %p64
      %p66 = scmp.ne.s32.totalorder %s57, %s58
      %p67 = scmp.eq.s32.totalorder %s26, 0
      %p68 = por %p66, %p67
      %p69 = scmp.ne.s32.totalorder %s57, %s58
      %p70 = scmp.eq.s32.totalorder %s27, 1
      %p71 = por %p69, %p70
      %p73 = scmp.ne.s32.totalorder %s58, %s72
      %p74 = scmp.eq.s32.totalorder %s27, 0
      %p75 = por %p73, %p74
      %s77 = sadd.s32 %s76, 1
      %p80 = scmp.eq.s32.totalorder %s21, 1
      %p81 = scmp.ne.s32.totalorder %s76, %s78
      %p82 = scmp.eq.s32.totalorder %s21, 0
      %p83 = por %p81, %p82
      %p84 = scmp.ne.s32.totalorder %s76, %s78
      %p85 = scmp.eq.s32.totalorder %s26, 1
      %p86 = por %p84, %p85
      %p87 = scmp.ne.s32.totalorder %s78, %s79
      %p88 = scmp.eq.s32.totalorder %s26, 0
      %p89 = por %p87, %p88
      %p90 = scmp.ne.s32.totalorder %s78, %s79
      %p91 = scmp.eq.s32.totalorder %s27, 1
      %p92 = por %p90, %p91
      %p94 = scmp.ne.s32.totalorder %s79, %s93
      %p95 = scmp.eq.s32.totalorder %s27, 0
      %p96 = por %p94, %p95
      %s97 = ssub.s32 %s21, %s28
      %p98 = scmp.eq.s32.totalorder %s97, 0
      %s100 = sadd.s32 %s99, 1
      %s101 = scalar_select %p98, %s99, %s100
      %p104 = pneg %p98
      %p105 = scmp.eq.s32.totalorder %s21, 1
      %p106 = por %p104, %p105
      %p107 = scmp.ne.s32.totalorder %s99, %s102
      %p108 = scmp.eq.s32.totalorder %s21, 0
      %p109 = por %p107, %p108
      %p110 = scmp.ne.s32.totalorder %s99, %s102
      %p111 = scmp.eq.s32.totalorder %s26, 1
      %p112 = por %p110, %p111
      %p113 = scmp.ne.s32.totalorder %s102, %s103
      %p114 = scmp.eq.s32.totalorder %s26, 0
      %p115 = por %p113, %p114
      %p116 = scmp.ne.s32.totalorder %s102, %s103
      %p117 = scmp.eq.s32.totalorder %s27, 1
      %p118 = por %p116, %p117
      %p120 = scmp.ne.s32.totalorder %s103, %s119
      %p121 = scmp.eq.s32.totalorder %s27, 0
      %p122 = por %p120, %p121
      %s123 = ssub.s32 %s21, %s28
      %p124 = scmp.eq.s32.totalorder %s123, 0
      %s126 = sadd.s32 %s125, 1
      %s127 = scalar_select %p124, %s125, %s126
      %p130 = pneg %p124
      %p131 = scmp.eq.s32.totalorder %s21, 1
      %p132 = por %p130, %p131
      %p133 = scmp.ne.s32.totalorder %s125, %s128
      %p134 = scmp.eq.s32.totalorder %s21, 0
      %p135 = por %p133, %p134
      %p136 = scmp.ne.s32.totalorder %s125, %s128
      %p137 = scmp.eq.s32.totalorder %s26, 1
      %p138 = por %p136, %p137
      %p139 = scmp.ne.s32.totalorder %s128, %s129
      %p140 = scmp.eq.s32.totalorder %s26, 0
      %p141 = por %p139, %p140
      %p142 = scmp.ne.s32.totalorder %s128, %s129
      %p143 = scmp.eq.s32.totalorder %s27, 1
      %p144 = por %p142, %p143
      %p146 = scmp.ne.s32.totalorder %s129, %s145
      %p147 = scmp.eq.s32.totalorder %s27, 0
      %p148 = por %p146, %p147
      %p149 = scmp.le.s32.totalorder 1, %s21
      %p150 = scmp.lt.s32.totalorder %s21, 3
      %p151 = pnand %p149, %p150
      %p152 = pneg %p151
      // Predicated region
      $region9: #{tpu_custom_call.1} parent=5 // pred_check
        _
      $region10: #{tpu_custom_call.1} parent=5 // pred_check_branch
        %154 = sbr.rel (%p151) target = $region12
      $region11: #{tpu_custom_call.1} parent=5 // pred_region
        %s155 = ssub.s32 %s21, 1
        // Predicated region
        $region13: #{tpu_custom_call.1} parent=11 // pred_check
          %p156 = pneg %p68
        $region14: #{tpu_custom_call.1} parent=11 // pred_check_branch
          %158 = sbr.rel (%p156) target = $region16
        $region15: #{tpu_custom_call.1} parent=11 // pred_region
          %160 = vsyncadd [#allocation6], 0
          %s161 = sshll.u32 %s1, 4
          %s162 = int_to_ptr.hbm [resolvable:$true] %s161
          %s163 = sshll.u32 [#allocation5], 4
          %s164 = int_to_ptr.vmem [resolvable:$true] %s163
          %169 = dma.hbm_to_vmem [thread:$0]  %s162, 3072, %s164, [#allocation6], 64, 64, 4
        $region16: #{tpu_custom_call.1} parent=11 // pred_fallthru
          _
        // Predicated region
        $region17: #{tpu_custom_call.1} parent=11 // pred_check
          %p170 = pneg %p89
        $region18: #{tpu_custom_call.1} parent=11 // pred_check_branch
          %172 = sbr.rel (%p170) target = $region20
        $region19: #{tpu_custom_call.1} parent=11 // pred_region
          %174 = vsyncadd [#allocation6], 0
          %s175 = sshll.u32 %s2, 4
          %s176 = int_to_ptr.hbm [resolvable:$true] %s175
          %s177 = sshll.u32 [#allocation7], 4
          %s178 = int_to_ptr.vmem [resolvable:$true] %s177
          %183 = dma.hbm_to_vmem [thread:$0]  %s176, 1024, %s178, [#allocation6], 64, 64, 4
        $region20: #{tpu_custom_call.1} parent=11 // pred_fallthru
          _
      $region12: #{tpu_custom_call.1} parent=5 // pred_fallthru
        _
      %p184 = scmp.lt.s32.totalorder %s21, 2
      // Predicated region
      $region21: #{tpu_custom_call.1} parent=5 // pred_check
        %p185 = pneg %p184
      $region22: #{tpu_custom_call.1} parent=5 // pred_check_branch
        %187 = sbr.rel (%p185) target = $region24
      $region23: #{tpu_custom_call.1} parent=5 // pred_region
        // Predicated region
        $region25: #{tpu_custom_call.1} parent=23 // pred_check
          %p188 = pneg %p41
        $region26: #{tpu_custom_call.1} parent=23 // pred_check_branch
          %190 = sbr.rel (%p188) target = $region28
        $region27: #{tpu_custom_call.1} parent=23 // pred_region
          %s191 = sand.u32 %s31, 1
          %s192 = scalar_lea.sflag [#allocation3], %s191
          %s193 = sand.u32 %s31, 1
          %s194 = smul.addr %s193, 8
          %s195 = scalar_lea.vmem [#allocation2], %s194
          %s196 = smul.u32 2, %s21
          %198 = vsyncadd %s192, 0
          %s199 = smul.addr %s196, 4
          %s200 = scalar_lea.hbm %s0, %s199
          %s201 = sshll.u32 %s200, 4
          %s202 = int_to_ptr.hbm [resolvable:$true] %s201
          %s203 = sshll.u32 %s195, 4
          %s204 = int_to_ptr.vmem [resolvable:$true] %s203
          %209 = dma.hbm_to_vmem [thread:$0]  %s202, 128, %s204, %s192, 64, 64, 4
        $region28: #{tpu_custom_call.1} parent=23 // pred_fallthru
          _
      $region24: #{tpu_custom_call.1} parent=5 // pred_fallthru
        _
      %p210 = scmp.le.s32.totalorder 1, %s21
      %p211 = scmp.lt.s32.totalorder %s21, 3
      %p212 = pnand %p210, %p211
      %p213 = pneg %p212
      // Predicated region
      $region29: #{tpu_custom_call.1} parent=5 // pred_check
        _
      $region30: #{tpu_custom_call.1} parent=5 // pred_check_branch
        %215 = sbr.rel (%p212) target = $region32
      $region31: #{tpu_custom_call.1} parent=5 // pred_region
        %s216 = ssub.s32 %s21, 1
        %s217 = sand.u32 %s34, 1
        %s218 = scalar_lea.sflag [#allocation3], %s217
        %s219 = sand.u32 %s34, 1
        %s220 = smul.addr %s219, 8
        %s221 = scalar_lea.vmem [#allocation2], %s220
        // Predicated region
        $region33: #{tpu_custom_call.1} parent=31 // pred_check
          %p222 = pneg %p47
        $region34: #{tpu_custom_call.1} parent=31 // pred_check_branch
          %224 = sbr.rel (%p222) target = $region36
        $region35: #{tpu_custom_call.1} parent=31 // pred_region
          %226 = dma.done %s218, 128
        $region36: #{tpu_custom_call.1} parent=31 // pred_fallthru
          _
        // Predicated region
        $region37: #{tpu_custom_call.1} parent=31 // pred_check
          %p227 = pneg %p68
        $region38: #{tpu_custom_call.1} parent=31 // pred_check_branch
          %229 = sbr.rel (%p227) target = $region40
        $region39: #{tpu_custom_call.1} parent=31 // pred_region
          %231 = dma.done [#allocation6], 3072
        $region40: #{tpu_custom_call.1} parent=31 // pred_fallthru
          _
        // Predicated region
        $region41: #{tpu_custom_call.1} parent=31 // pred_check
          %p232 = pneg %p89
        $region42: #{tpu_custom_call.1} parent=31 // pred_check_branch
          %234 = sbr.rel (%p232) target = $region44
        $region43: #{tpu_custom_call.1} parent=31 // pred_region
          %236 = dma.done [#allocation6], 1024
        $region44: #{tpu_custom_call.1} parent=31 // pred_fallthru
          _
        %s237 = sand.u32 %s34, 1
        %s238 = scalar_lea.sflag [#allocation3], %s237
        %s239 = sand.u32 %s34, 1
        %s240 = smul.addr %s239, 8
        %s241 = scalar_lea.vmem [#allocation2], %s240
        %p242 = pneg %p47
        %p243 = pneg %p44
        %p244 = pneg %p68
        %p245 = pneg %p65
        %p246 = pneg %p89
        %p247 = pneg %p86
        %p248 = pneg %p115
        %p249 = pneg %p112
        %s250 = sand.u32 %s102, 1
        %s251 = scalar_lea.sflag [#allocation4], %s250
        %s252 = sand.u32 %s102, 1
        %s253 = smul.addr %s252, 8
        %s254 = scalar_lea.vmem [#allocation8], %s253
        %p255 = pneg %p141
        %p256 = pneg %p138
        %s257 = sand.u32 %s128, 1
        %s258 = scalar_lea.sflag [#allocation10], %s257
        %s259 = sand.u32 %s128, 1
        %s260 = smul.addr %s259, 8
        %s261 = scalar_lea.vmem [#allocation9], %s260
        %s262 = smul.u32 2, %s26
        %s263 = smul.u32 2, %s26
        %v264 = vld [vmem:[%s221] sm:$0xf]
        %v265 = vld [vmem:[%s221 + $0x4] sm:$0xf]
        %v266 = vld [vmem:[#allocation5] sm:$0xf]
        %v267 = vld [vmem:[#allocation5 + $0x4] sm:$0xf]
        %v268 = vld [vmem:[#allocation5 + $0x8] sm:$0xf]
        %v269 = vld [vmem:[#allocation5 + $0xc] sm:$0xf]
        %v270 = vld [vmem:[#allocation5 + $0x10] sm:$0xf]
        %v271 = vld [vmem:[#allocation5 + $0x14] sm:$0xf]
        %v272 = vld [vmem:[#allocation5 + $0x18] sm:$0xf]
        %v273 = vld [vmem:[#allocation5 + $0x1c] sm:$0xf]
        %v274 = vld [vmem:[#allocation5 + $0x20] sm:$0xf]
        %v275 = vld [vmem:[#allocation5 + $0x24] sm:$0xf]
        %v276 = vld [vmem:[#allocation5 + $0x28] sm:$0xf]
        %v277 = vld [vmem:[#allocation5 + $0x2c] sm:$0xf]
        %v278 = vld [vmem:[#allocation5 + $0x30] sm:$0xf]
        %v279 = vld [vmem:[#allocation5 + $0x34] sm:$0xf]
        %v280 = vld [vmem:[#allocation5 + $0x38] sm:$0xf]
        %v281 = vld [vmem:[#allocation5 + $0x3c] sm:$0xf]
        %v284 = vunpack.c.l.b16 %v264
        %v285 = vunpack.c.l.b16 %v265
        %v286 = vpack.c.b16 %v285, %v284
        %v304 = vunpack.c.l.b16 %v266
        %v305 = vunpack.c.l.b16 %v267
        %v306 = vunpack.c.l.b16 %v268
        %v307 = vunpack.c.l.b16 %v269
        %v308 = vunpack.c.l.b16 %v270
        %v309 = vunpack.c.l.b16 %v271
        %v310 = vunpack.c.l.b16 %v272
        %v311 = vunpack.c.l.b16 %v273
        %v312 = vunpack.c.l.b16 %v274
        %v313 = vunpack.c.l.b16 %v275
        %v314 = vunpack.c.l.b16 %v276
        %v315 = vunpack.c.l.b16 %v277
        %v316 = vunpack.c.l.b16 %v278
        %v317 = vunpack.c.l.b16 %v279
        %v318 = vunpack.c.l.b16 %v280
        %v319 = vunpack.c.l.b16 %v281
        %v320 = vpack.c.b16 %v305, %v304
        %v321 = vpack.c.b16 %v307, %v306
        %v322 = vpack.c.b16 %v309, %v308
        %v323 = vpack.c.b16 %v311, %v310
        %v324 = vpack.c.b16 %v313, %v312
        %v325 = vpack.c.b16 %v315, %v314
        %v326 = vpack.c.b16 %v317, %v316
        %v327 = vpack.c.b16 %v319, %v318
        %336 = vmatpush.bf16.msra.mxu0 %v327
        %337 = vmatpush.bf16.msra.mxu0 %v326
        %338 = vmatpush.bf16.msra.mxu0 %v325
        %339 = vmatpush.bf16.msra.mxu0 %v324
        %340 = vmatpush.bf16.msra.mxu0 %v323
        %341 = vmatpush.bf16.msra.mxu0 %v322
        %342 = vmatpush.bf16.msra.mxu0 %v321
        %343 = vmatpush.bf16.msra.mxu0 %v320
        %344 = vmatmul.bf16.gmra.mxu0 %v286
        %v345 = vpop.f32.mrf.mxu0
        %v346 = vadd.f32 0.0, %v345
        %v347 = vpop.f32.mrf.mxu0
        %v348 = vadd.f32 0.0, %v347
        %349 = vdwg.mxu0
        %v350 = vld [vmem:[#allocation5 + $0x40] sm:$0xf]
        %v351 = vld [vmem:[#allocation5 + $0x44] sm:$0xf]
        %v352 = vld [vmem:[#allocation5 + $0x48] sm:$0xf]
        %v353 = vld [vmem:[#allocation5 + $0x4c] sm:$0xf]
        %v354 = vld [vmem:[#allocation5 + $0x50] sm:$0xf]
        %v355 = vld [vmem:[#allocation5 + $0x54] sm:$0xf]
        %v356 = vld [vmem:[#allocation5 + $0x58] sm:$0xf]
        %v357 = vld [vmem:[#allocation5 + $0x5c] sm:$0xf]
        %v358 = vld [vmem:[#allocation5 + $0x60] sm:$0xf]
        %v359 = vld [vmem:[#allocation5 + $0x64] sm:$0xf]
        %v360 = vld [vmem:[#allocation5 + $0x68] sm:$0xf]
        %v361 = vld [vmem:[#allocation5 + $0x6c] sm:$0xf]
        %v362 = vld [vmem:[#allocation5 + $0x70] sm:$0xf]
        %v363 = vld [vmem:[#allocation5 + $0x74] sm:$0xf]
        %v364 = vld [vmem:[#allocation5 + $0x78] sm:$0xf]
        %v365 = vld [vmem:[#allocation5 + $0x7c] sm:$0xf]
        %v382 = vunpack.c.l.b16 %v350
        %v383 = vunpack.c.l.b16 %v351
        %v384 = vunpack.c.l.b16 %v352
        %v385 = vunpack.c.l.b16 %v353
        %v386 = vunpack.c.l.b16 %v354
        %v387 = vunpack.c.l.b16 %v355
        %v388 = vunpack.c.l.b16 %v356
        %v389 = vunpack.c.l.b16 %v357
        %v390 = vunpack.c.l.b16 %v358
        %v391 = vunpack.c.l.b16 %v359
        %v392 = vunpack.c.l.b16 %v360
        %v393 = vunpack.c.l.b16 %v361
        %v394 = vunpack.c.l.b16 %v362
        %v395 = vunpack.c.l.b16 %v363
        %v396 = vunpack.c.l.b16 %v364
        %v397 = vunpack.c.l.b16 %v365
        %v398 = vpack.c.b16 %v383, %v382
        %v399 = vpack.c.b16 %v385, %v384
        %v400 = vpack.c.b16 %v387, %v386
        %v401 = vpack.c.b16 %v389, %v388
        %v402 = vpack.c.b16 %v391, %v390
        %v403 = vpack.c.b16 %v393, %v392
        %v404 = vpack.c.b16 %v395, %v394
        %v405 = vpack.c.b16 %v397, %v396
        %414 = vmatpush.bf16.msra.mxu0 %v405
        %415 = vmatpush.bf16.msra.mxu0 %v404
        %416 = vmatpush.bf16.msra.mxu0 %v403
        %417 = vmatpush.bf16.msra.mxu0 %v402
        %418 = vmatpush.bf16.msra.mxu0 %v401
        %419 = vmatpush.bf16.msra.mxu0 %v400
        %420 = vmatpush.bf16.msra.mxu0 %v399
        %421 = vmatpush.bf16.msra.mxu0 %v398
        %422 = vmatmul.bf16.gmra.mxu0 %v286
        %v423 = vpop.f32.mrf.mxu0
        %v424 = vadd.f32 0.0, %v423
        %v425 = vpop.f32.mrf.mxu0
        %v426 = vadd.f32 0.0, %v425
        %427 = vdwg.mxu0
        %v428 = vld [vmem:[#allocation5 + $0x80] sm:$0xf]
        %v429 = vld [vmem:[#allocation5 + $0x84] sm:$0xf]
        %v430 = vld [vmem:[#allocation5 + $0x88] sm:$0xf]
        %v431 = vld [vmem:[#allocation5 + $0x8c] sm:$0xf]
        %v432 = vld [vmem:[#allocation5 + $0x90] sm:$0xf]
        %v433 = vld [vmem:[#allocation5 + $0x94] sm:$0xf]
        %v434 = vld [vmem:[#allocation5 + $0x98] sm:$0xf]
        %v435 = vld [vmem:[#allocation5 + $0x9c] sm:$0xf]
        %v436 = vld [vmem:[#allocation5 + $0xa0] sm:$0xf]
        %v437 = vld [vmem:[#allocation5 + $0xa4] sm:$0xf]
        %v438 = vld [vmem:[#allocation5 + $0xa8] sm:$0xf]
        %v439 = vld [vmem:[#allocation5 + $0xac] sm:$0xf]
        %v440 = vld [vmem:[#allocation5 + $0xb0] sm:$0xf]
        %v441 = vld [vmem:[#allocation5 + $0xb4] sm:$0xf]
        %v442 = vld [vmem:[#allocation5 + $0xb8] sm:$0xf]
        %v443 = vld [vmem:[#allocation5 + $0xbc] sm:$0xf]
        %v460 = vunpack.c.l.b16 %v428
        %v461 = vunpack.c.l.b16 %v429
        %v462 = vunpack.c.l.b16 %v430
        %v463 = vunpack.c.l.b16 %v431
        %v464 = vunpack.c.l.b16 %v432
        %v465 = vunpack.c.l.b16 %v433
        %v466 = vunpack.c.l.b16 %v434
        %v467 = vunpack.c.l.b16 %v435
        %v468 = vunpack.c.l.b16 %v436
        %v469 = vunpack.c.l.b16 %v437
        %v470 = vunpack.c.l.b16 %v438
        %v471 = vunpack.c.l.b16 %v439
        %v472 = vunpack.c.l.b16 %v440
        %v473 = vunpack.c.l.b16 %v441
        %v474 = vunpack.c.l.b16 %v442
        %v475 = vunpack.c.l.b16 %v443
        %v476 = vpack.c.b16 %v461, %v460
        %v477 = vpack.c.b16 %v463, %v462
        %v478 = vpack.c.b16 %v465, %v464
        %v479 = vpack.c.b16 %v467, %v466
        %v480 = vpack.c.b16 %v469, %v468
        %v481 = vpack.c.b16 %v471, %v470
        %v482 = vpack.c.b16 %v473, %v472
        %v483 = vpack.c.b16 %v475, %v474
        %492 = vmatpush.bf16.msra.mxu0 %v483
        %493 = vmatpush.bf16.msra.mxu0 %v482
        %494 = vmatpush.bf16.msra.mxu0 %v481
        %495 = vmatpush.bf16.msra.mxu0 %v480
        %496 = vmatpush.bf16.msra.mxu0 %v479
        %497 = vmatpush.bf16.msra.mxu0 %v478
        %498 = vmatpush.bf16.msra.mxu0 %v477
        %499 = vmatpush.bf16.msra.mxu0 %v476
        %500 = vmatmul.bf16.gmra.mxu0 %v286
        %v501 = vpop.f32.mrf.mxu0
        %v502 = vadd.f32 0.0, %v501
        %v503 = vpop.f32.mrf.mxu0
        %v504 = vadd.f32 0.0, %v503
        %505 = vdwg.mxu0
        %v506 = vlaneseq
        %v507 = vshrl.u32 %v506, 7
        %v508 = vadd.s32 %v507, 8
        %vm509 = vcmp.lt.s32.totalorder %v507, 0
        %v510 = vsub.s32 0, %v507
        %v511 = vsel %vm509, %v510, %v507
        %v512 = vshrl.u32 %v511, 4
        %v513 = vand.u32 %v511, 15
        %v514 = vsub.s32 0, %v513
        %v515 = vsel %vm509, %v514, %v513
        %vm516 = vcmp.lt.s32.totalorder %v508, 0
        %v517 = vsub.s32 0, %v508
        %v518 = vsel %vm516, %v517, %v508
        %v519 = vshrl.u32 %v518, 4
        %v520 = vand.u32 %v518, 15
        %v521 = vsub.s32 0, %v520
        %v522 = vsel %vm516, %v521, %v520
        %vm523 = vcmp.ne.s32.totalorder %v515, 0
        %vm524 = vcmp.ne.s32.totalorder %v522, 0
        %vm525 = vcmp.lt.s32.totalorder %v515, 0
        %vm526 = vcmp.lt.s32.totalorder %v522, 0
        %vm527 = vmand %vm525, %vm523
        %vm528 = vmand %vm526, %vm524
        %v529 = vadd.s32 %v515, 16
        %v530 = vadd.s32 %v522, 16
        %v531 = vsel %vm527, %v529, %v515
        %v532 = vsel %vm528, %v530, %v522
        %vm533 = vcmp.ne.s32.totalorder %v531, 0
        %vm534 = vcmp.ne.s32.totalorder %v532, 0
        %v535 = vsel %vm533, 1, 0
        %v536 = vsel %vm534, 1, 0
        %v537 = vcvt.s32.f32 %v535
        %v538 = vcvt.s32.f32 %v536
        %vm539 = vcmp.ne.s32.totalorder %v531, 15
        %vm540 = vcmp.ne.s32.totalorder %v532, 15
        %v541 = vsel %vm539, 1, 0
        %v542 = vsel %vm540, 1, 0
        %v543 = vcvt.s32.f32 %v541
        %v544 = vcvt.s32.f32 %v542
        %v545 = vrot.slane %v346, 7
        %v546 = vrot.slane %v348, 7
        %vm547 = vcmp.lt.s32.totalorder %v507, 1
        %v548 = vsel %vm547, %v545, %v546
        %v549 = vsel %vm547, %v546, %v545
        %v550 = vmul.f32 %v549, %v537
        %v551 = vmul.f32 %v548, %v538
        %v552 = vadd.f32 %v550, %v424
        %v553 = vadd.f32 %v551, %v426
        %v554 = vrot.slane %v502, 1
        %v555 = vrot.slane %v504, 1
        %vm556 = vcmp.lt.s32.totalorder %v507, 7
        %v557 = vsel %vm556, %v554, %v555
        %v558 = vsel %vm556, %v555, %v554
        %v559 = vmul.f32 %v557, %v543
        %v560 = vmul.f32 %v558, %v544
        %v561 = vadd.f32 %v552, %v559
        %v562 = vadd.f32 %v553, %v560
        %v563 = vpack.c.bf16 %v561, %v561
        %v564 = vpack.c.bf16 %v562, %v562
        %565 = vst [vmem:[%s254] sm:$0xf] %v563
        %566 = vst [vmem:[%s254 + $0x4] sm:$0xf] %v564
        %v567 = vadd.f32 %v561, %v562
        %v568 = vrot.slane %v567, 4
        %v569 = vadd.f32 %v567, %v568
        %v570 = vrot.slane %v569, 2
        %v571 = vadd.f32 %v569, %v570
        %v572 = vrot.slane %v571, 1
        %v573 = vadd.f32 %v571, %v572
        %v574 = vmul.f32 %v561, %v561
        %v575 = vmul.f32 %v562, %v562
        %v576 = vadd.f32 %v574, %v575
        %v577 = vrot.slane %v576, 4
        %v578 = vadd.f32 %v576, %v577
        %v579 = vrot.slane %v578, 2
        %v580 = vadd.f32 %v578, %v579
        %v581 = vrot.slane %v580, 1
        %v582 = vadd.f32 %v580, %v581
        %v583 = vld [vmem:[#allocation7] sm:$0xf]
        %v584 = vld [vmem:[#allocation7 + $0x4] sm:$0xf]
        %v585 = vld [vmem:[#allocation7 + $0x8] sm:$0xf]
        %v586 = vld [vmem:[#allocation7 + $0xc] sm:$0xf]
        %v587 = vld [vmem:[#allocation7 + $0x10] sm:$0xf]
        %v588 = vld [vmem:[#allocation7 + $0x14] sm:$0xf]
        %v589 = vld [vmem:[#allocation7 + $0x18] sm:$0xf]
        %v590 = vld [vmem:[#allocation7 + $0x1c] sm:$0xf]
        %v591 = vld [vmem:[#allocation7 + $0x20] sm:$0xf]
        %v592 = vld [vmem:[#allocation7 + $0x24] sm:$0xf]
        %v593 = vld [vmem:[#allocation7 + $0x28] sm:$0xf]
        %v594 = vld [vmem:[#allocation7 + $0x2c] sm:$0xf]
        %v595 = vld [vmem:[#allocation7 + $0x30] sm:$0xf]
        %v596 = vld [vmem:[#allocation7 + $0x34] sm:$0xf]
        %v597 = vld [vmem:[#allocation7 + $0x38] sm:$0xf]
        %v598 = vld [vmem:[#allocation7 + $0x3c] sm:$0xf]
        %v615 = vunpack.c.l.b16 %v583
        %v616 = vunpack.c.l.b16 %v584
        %v617 = vunpack.c.l.b16 %v585
        %v618 = vunpack.c.l.b16 %v586
        %v619 = vunpack.c.l.b16 %v587
        %v620 = vunpack.c.l.b16 %v588
        %v621 = vunpack.c.l.b16 %v589
        %v622 = vunpack.c.l.b16 %v590
        %v623 = vunpack.c.l.b16 %v591
        %v624 = vunpack.c.l.b16 %v592
        %v625 = vunpack.c.l.b16 %v593
        %v626 = vunpack.c.l.b16 %v594
        %v627 = vunpack.c.l.b16 %v595
        %v628 = vunpack.c.l.b16 %v596
        %v629 = vunpack.c.l.b16 %v597
        %v630 = vunpack.c.l.b16 %v598
        %v631 = vpack.c.b16 %v616, %v615
        %v632 = vpack.c.b16 %v618, %v617
        %v633 = vpack.c.b16 %v620, %v619
        %v634 = vpack.c.b16 %v622, %v621
        %v635 = vpack.c.b16 %v624, %v623
        %v636 = vpack.c.b16 %v626, %v625
        %v637 = vpack.c.b16 %v628, %v627
        %v638 = vpack.c.b16 %v630, %v629
        %647 = vmatpush.bf16.msra.mxu0 %v638
        %648 = vmatpush.bf16.msra.mxu0 %v637
        %649 = vmatpush.bf16.msra.mxu0 %v636
        %650 = vmatpush.bf16.msra.mxu0 %v635
        %651 = vmatpush.bf16.msra.mxu0 %v634
        %652 = vmatpush.bf16.msra.mxu0 %v633
        %653 = vmatpush.bf16.msra.mxu0 %v632
        %654 = vmatpush.bf16.msra.mxu0 %v631
        %655 = vmatmul.bf16.gmra.mxu0 %v286
        %v656 = vpop.f32.mrf.mxu0
        %v657 = vadd.f32 0.0, %v656
        %v658 = vpop.f32.mrf.mxu0
        %v659 = vadd.f32 0.0, %v658
        %660 = vdwg.mxu0
        %v661 = vadd.f32 %v657, %v659
        %v662 = vrot.slane %v661, 4
        %v663 = vadd.f32 %v661, %v662
        %v664 = vrot.slane %v663, 2
        %v665 = vadd.f32 %v663, %v664
        %v666 = vrot.slane %v665, 1
        %v667 = vadd.f32 %v665, %v666
        %v668 = vmul.f32 %v657, %v657
        %v669 = vmul.f32 %v659, %v659
        %v670 = vadd.f32 %v668, %v669
        %v671 = vrot.slane %v670, 4
        %v672 = vadd.f32 %v670, %v671
        %v673 = vrot.slane %v672, 2
        %v674 = vadd.f32 %v672, %v673
        %v675 = vrot.slane %v674, 1
        %v676 = vadd.f32 %v674, %v675
        %vm677 = vcmask 1040384
        %v678 = vsel %vm677, %v573, %v582
        %vm679 = vcmask 1041408
        %v680 = vsel %vm679, %v678, %v667
        %vm681 = vcmask 1042432
        %v682 = vsel %vm681, %v680, %v676
        %vm683 = vcmask 1043456
        %v684 = vsel %vm683, %v682, 0.0
        %685 = vst [vmem:[%s261] sm:$0xff] %v684
        %s686 = sand.u32 %s102, 1
        %s687 = scalar_lea.sflag [#allocation4], %s686
        %s688 = sand.u32 %s102, 1
        %s689 = smul.addr %s688, 8
        %s690 = scalar_lea.vmem [#allocation8], %s689
        %s691 = sand.u32 %s128, 1
        %s692 = scalar_lea.sflag [#allocation10], %s691
        %s693 = sand.u32 %s128, 1
        %s694 = smul.addr %s693, 8
        %s695 = scalar_lea.vmem [#allocation9], %s694
        // Predicated region
        $region45: #{tpu_custom_call.1} parent=31 // pred_check
          %p696 = pneg %p112
        $region46: #{tpu_custom_call.1} parent=31 // pred_check_branch
          %698 = sbr.rel (%p696) target = $region48
        $region47: #{tpu_custom_call.1} parent=31 // pred_region
          %s699 = smul.u32 2, %s26
          %701 = vsyncadd %s687, 0
          %s702 = smul.addr %s699, 4
          %s703 = scalar_lea.hbm %s3, %s702
          %s704 = sshll.u32 %s690, 4
          %s705 = int_to_ptr.vmem [resolvable:$true] %s704
          %s706 = sshll.u32 %s703, 4
          %s707 = int_to_ptr.hbm [resolvable:$true] %s706
          %712 = dma.vmem_to_hbm [thread:$0]  %s705, 128, %s707, %s687, 64, 64, 4
        $region48: #{tpu_custom_call.1} parent=31 // pred_fallthru
          _
        // Predicated region
        $region49: #{tpu_custom_call.1} parent=31 // pred_check
          %p713 = pneg %p138
        $region50: #{tpu_custom_call.1} parent=31 // pred_check_branch
          %715 = sbr.rel (%p713) target = $region52
        $region51: #{tpu_custom_call.1} parent=31 // pred_region
          %717 = vsyncadd %s692, 0
          %s718 = smul.addr %s26, 8
          %s719 = scalar_lea.hbm %s4, %s718
          %s721 = sshll.u32 %s695, 4
          %s722 = int_to_ptr.vmem [resolvable:$true] %s721
          %s723 = sshll.u32 %s719, 4
          %s724 = int_to_ptr.hbm [resolvable:$true] %s723
          %726 = dma.vmem_to_hbm [thread:$0]  %s722, 128, %s724, %s692
        $region52: #{tpu_custom_call.1} parent=31 // pred_fallthru
          _
      $region32: #{tpu_custom_call.1} parent=5 // pred_fallthru
        _
      %p727 = scmp.le.s32.totalorder 2, %s21
      // Predicated region
      $region53: #{tpu_custom_call.1} parent=5 // pred_check
        %p728 = pneg %p727
      $region54: #{tpu_custom_call.1} parent=5 // pred_check_branch
        %730 = sbr.rel (%p728) target = $region56
      $region55: #{tpu_custom_call.1} parent=5 // pred_region
        %s731 = ssub.s32 %s21, 2
        // Predicated region
        $region57: #{tpu_custom_call.1} parent=55 // pred_check
          %p732 = pneg %p118
        $region58: #{tpu_custom_call.1} parent=55 // pred_check_branch
          %734 = sbr.rel (%p732) target = $region60
        $region59: #{tpu_custom_call.1} parent=55 // pred_region
          %s735 = sand.u32 %s103, 1
          %s736 = scalar_lea.sflag [#allocation4], %s735
          %s737 = sand.u32 %s103, 1
          %s738 = smul.addr %s737, 8
          %s739 = scalar_lea.vmem [#allocation8], %s738
          %741 = dma.done %s736, 128
        $region60: #{tpu_custom_call.1} parent=55 // pred_fallthru
          _
        // Predicated region
        $region61: #{tpu_custom_call.1} parent=55 // pred_check
          %p742 = pneg %p144
        $region62: #{tpu_custom_call.1} parent=55 // pred_check_branch
          %744 = sbr.rel (%p742) target = $region64
        $region63: #{tpu_custom_call.1} parent=55 // pred_region
          %s745 = sand.u32 %s129, 1
          %s746 = scalar_lea.sflag [#allocation10], %s745
          %s747 = sand.u32 %s129, 1
          %s748 = smul.addr %s747, 8
          %s749 = scalar_lea.vmem [#allocation9], %s748
          %751 = dma.done %s746, 128
        $region64: #{tpu_custom_call.1} parent=55 // pred_fallthru
          _
      $region56: #{tpu_custom_call.1} parent=5 // pred_fallthru
        _
    $region6: #{tpu_custom_call.1} parent=1 // loop_footer
      %s25 = sadd.s32 1, %s21
    $region7: #{tpu_custom_call.1} parent=1 // loop_footer_branch
      %20 = sbr.rel target = $region3
    $region8: #{tpu_custom_call.1} parent=1 // loop_exit
      _
    %752 = vsyncpa [#allocation3], 1
    %s753 = scalar_lea.sflag [#allocation3], 1
    %754 = vsyncpa %s753, 1
    %755 = vsyncpa [#allocation6], 1
    %756 = vsyncpa [#allocation4], 1
    %s757 = scalar_lea.sflag [#allocation4], 1
    %758 = vsyncpa %s757, 1
    %759 = vsyncpa [#allocation10], 1
    %s760 = scalar_lea.sflag [#allocation10], 1
    %761 = vsyncpa %s760, 1

</llo_original>
